<compile_context>
chip_gen: v7x
topology: tpu7x:2x2x1
jax: 0.10.0
libtpu: 0.0.40
codegen_flags: <defaults>
</compile_context>

<pallas_src>
import jax
import jax.numpy as jnp
from jax.experimental import pallas as pl
from jax.experimental.pallas import tpu as pltpu


def _silu(x):
    return x * jax.nn.sigmoid(x)


def _round_up(n, m):
    return ((n + m - 1) // m) * m


def _cdiv(a, b):
    return -(-a // b)


def make_ptnet_kernel(n_trunk_linears, residual, concat):
    """Kernel body for a fixed (static) PTNet configuration.

    Ref order: x, inv_scale, shift, (W, b) per trunk Linear, Wout, bout, out.
    """
    n_res_blocks = (n_trunk_linears - 1) // 2 if residual else 0

    def kernel(x_ref, inv_ref, shift_ref, *rest):
        out_ref = rest[-1]
        pr = rest[:-1]

        # (x - mean) / scale in f32 on the VPU (which has slack).  Keeping the
        # normalization out of the bf16 weights preserves conditioning.
        xn = x_ref[...] * inv_ref[...] - shift_ref[...]

        def linear(h, w_ref, b_ref):
            w = w_ref[...]
            return jnp.dot(h.astype(w.dtype), w,
                           preferred_element_type=jnp.float32) + b_ref[...]

        p = 0
        if residual:
            # Linear(input, dim) + SiLU, then ResidualBlock x n_res_blocks.
            h = _silu(linear(xn, pr[0], pr[1]))
            p = 2
            for _ in range(n_res_blocks):
                t = _silu(linear(h, pr[p], pr[p + 1]))
                t = linear(t, pr[p + 2], pr[p + 3])
                h = _silu(t + h)
                p += 4
        else:
            h = xn
            for _ in range(n_trunk_linears):
                h = _silu(linear(h, pr[p], pr[p + 1]))
                p += 2

        if concat:
            # Input lanes of h are exactly zero and trunk lanes of xn are
            # exactly zero, so this add IS torch.cat((trunk, xn), dim=1);
            # the output layer below is then a single MXU dot.
            h = h + xn

        w_out = pr[p][...]
        out = jnp.dot(h.astype(w_out.dtype), w_out,
                      preferred_element_type=jnp.float32) + pr[p + 1][...]
        out_ref[...] = out.astype(out_ref.dtype)

    return kernel


def prepare_params(params, *, residual, concat, dtype=jnp.bfloat16):
    """One-time parameter preprocessing (pure JAX, outside the kernel).

    * Weights cast to `dtype` (default bf16 -> MXU fast path, f32 accumulate).
    * Normalization vectors kept in f32 (applied in-kernel).
    * concat mode: embed the trunk into a C = max(hidden)+input_dim lane
      space so the output layer is one dot against the original stacked Wout.
      The widening is free on the MXU (K, N stay within one pass for typical
      PTNet widths) and on the VPU (still one 128-lane tile).
    """
    mean = jnp.asarray(params["mean"], jnp.float32)
    scale = jnp.asarray(params["scale"], jnp.float32)
    inv_scale = 1.0 / scale
    shift = mean * inv_scale          # xn = x * inv_scale - shift

    trunk = [(jnp.asarray(W, jnp.float32), jnp.asarray(b, jnp.float32))
             for W, b in params["trunk"]]
    Wout, bout = params["out"]
    Wout = jnp.asarray(Wout, jnp.float32)
    bout = jnp.asarray(bout, jnp.float32)

    input_dim = trunk[0][0].shape[0]
    widths = [W.shape[1] for W, _ in trunk]
    h_last = widths[-1]
    output_dim = Wout.shape[1]

    if concat:
        h_max = max(widths)
        c = h_max + input_dim
        trunk_k = []
        for li, (W, b) in enumerate(trunk):
            in_d, out_d = W.shape
            row0 = h_max if li == 0 else 0      # layer 0 reads the input lanes
            Ww = jnp.zeros((c, c), jnp.float32).at[row0:row0 + in_d, :out_d].set(W)
            bw = jnp.zeros((c,), jnp.float32).at[:out_d].set(b)
            trunk_k.append((Ww.astype(dtype), bw.reshape(1, -1)))
        inv_w = jnp.zeros((c,), jnp.float32).at[h_max:h_max + input_dim].set(inv_scale)
        shift_w = jnp.zeros((c,), jnp.float32).at[h_max:h_max + input_dim].set(shift)
        Wout_w = (jnp.zeros((c, output_dim), jnp.float32)
                  .at[:h_last, :].set(Wout[:h_last])
                  .at[h_max:h_max + input_dim, :].set(Wout[h_last:]))
        prepared_wout = Wout_w.astype(dtype)
        x_dim = c
        x_pad_left = h_max
    else:
        trunk_k = [(W.astype(dtype), b.reshape(1, -1)) for W, b in trunk]
        inv_w = inv_scale
        shift_w = shift
        prepared_wout = Wout.astype(dtype)
        x_dim = input_dim
        x_pad_left = 0

    return {
        "trunk": trunk_k,
        "Wout": prepared_wout,
        "bout": bout.reshape(1, -1),
        "inv": inv_w.reshape(1, -1),
        "shift": shift_w.reshape(1, -1),
        "input_dim": input_dim,
        "x_dim": x_dim,
        "x_pad_left": x_pad_left,
        "output_dim": output_dim,
        "residual": residual,
        "concat": concat,
    }


def _num_tensorcores():
    """2 for 2-TensorCore-per-device chips (v4/v5p megacore, v7x), else 1."""
    try:
        kind = jax.devices()[0].device_kind.lower()
    except Exception:
        return 1
    return 2 if any(tag in kind for tag in ("v4", "v5p", "v7")) else 1


def _pick_grid(batch, tile_b, n_cores):
    """Choose (tile, num_steps, padded_batch).

    num_steps = cdiv(batch, tile_b), tile = cdiv(batch, num_steps) rounded to
    8 -> padding waste < 8 rows per step.  On 2-TC chips keep >= 2*n_cores
    steps (when the batch allows) so both cores get pipelined work; 1-TC
    chips (v5e/v6e) never pay extra grid steps.
    """
    bp = _round_up(max(int(batch), 1), 8)
    tile_b = _round_up(max(int(tile_b), 8), 8)
    num_steps = _cdiv(bp, tile_b)
    if n_cores > 1:
        num_steps = max(num_steps, min(2 * n_cores, bp // 8))
    num_steps = max(num_steps, 1)
    tile = _round_up(_cdiv(bp, num_steps), 8)
    num_steps = _cdiv(bp, tile)
    return tile, num_steps, tile * num_steps


def ptnet_forward(x, prepared, *, tile_b=2048):
    """Run PTNet forward with a single pallas_call, tiled over batch."""
    B, input_dim = x.shape
    assert input_dim == prepared["input_dim"]
    output_dim = prepared["output_dim"]
    x_dim = prepared["x_dim"]
    x_pad_left = prepared["x_pad_left"]

    tile, num_steps, b_pad = _pick_grid(B, tile_b, _num_tensorcores())

    x = x.astype(jnp.float32)
    pad_right = x_dim - x_pad_left - input_dim
    if (b_pad != B) or x_pad_left or pad_right:
        # Row-pad to the grid, and (concat mode) place x in its lane slot.
        x = jnp.pad(x, ((0, b_pad - B), (x_pad_left, pad_right)))

    flat = [x, prepared["inv"], prepared["shift"]]
    for W, b in prepared["trunk"]:
        flat += [W, b]
    flat += [prepared["Wout"], prepared["bout"]]

    kernel = make_ptnet_kernel(len(prepared["trunk"]), prepared["residual"],
                               prepared["concat"])

    # x and the output are tiled over batch; every parameter uses the same
    # whole-array block each grid step (broadcast, VMEM-resident).
    # TODO(synk): pl.Buffered(1) on the parameter specs would drop their
    # unneeded double buffers; skipped since total VMEM here is tiny.
    in_specs = [pl.BlockSpec((tile, x_dim), lambda i: (i, 0))]
    in_specs += [pl.BlockSpec(a.shape, lambda i: (0, 0)) for a in flat[1:]]
    # Natural (un-padded) output width: masked stores, but no extra HBM pass
    # for a wrapper lane-slice (stores are not the bottleneck here).
    out_specs = pl.BlockSpec((tile, output_dim), lambda i: (i, 0))

    out = pl.pallas_call(
        kernel,
        out_shape=jax.ShapeDtypeStruct((b_pad, output_dim), jnp.float32),
        grid_spec=pltpu.PrefetchScalarGridSpec(
            num_scalar_prefetch=0,
            grid=(num_steps,),
            in_specs=in_specs,
            out_specs=out_specs,
        ),
        compiler_params=pltpu.CompilerParams(
            dimension_semantics=("parallel",),
            vmem_limit_bytes=32 * 1024 * 1024,
        ),
    )(*flat)
    return out[:B] if b_pad != B else out


def ptnet_reference(x, params, *, residual, concat):
    """Pure-JAX reference matching the PyTorch forward semantics."""
    xn = (x - params["mean"]) / params["scale"]
    trunk = params["trunk"]
    if residual:
        W, b = trunk[0]
        h = jax.nn.silu(xn @ W + b)
        i = 1
        while i < len(trunk):
            (W1, b1), (W2, b2) = trunk[i], trunk[i + 1]
            t = jax.nn.silu(h @ W1 + b1)
            t = t @ W2 + b2
            h = jax.nn.silu(t + h)
            i += 2
    else:
        h = xn
        for W, b in trunk:
            h = jax.nn.silu(h @ W + b)
    if concat:
        h = jnp.concatenate([h, xn], axis=1)
    Wout, bout = params["out"]
    return h @ Wout + bout


def init_params(key, input_dim, output_dim, units, *, residual, concat):
    """Deterministic synthetic parameter init (shapes match the nn.Linear layers)."""
    keys = jax.random.split(key, 64)
    ki = 0
    trunk = []
    if residual:
        assert len(units) % 2 == 1, "If residual=True, layers must be odd."
        dim = units[0]
        W = jax.random.normal(keys[ki], (input_dim, dim), jnp.float32) / jnp.sqrt(
            jnp.float32(input_dim))
        ki += 1
        trunk.append((W, jnp.zeros((dim,), jnp.float32)))
        for _ in range((len(units) - 1) // 2):
            for _ in range(2):  # ResidualBlock.l1, .l2
                W = jax.random.normal(keys[ki], (dim, dim), jnp.float32) / jnp.sqrt(
                    jnp.float32(dim))
                ki += 1
                trunk.append((W, jnp.zeros((dim,), jnp.float32)))
    else:
        in_dim = input_dim
        for out_dim_l in units:
            # kaiming_normal_(mode='fan_in', nonlinearity='relu'): std = sqrt(2/fan_in)
            W = jax.random.normal(keys[ki], (in_dim, out_dim_l), jnp.float32) * jnp.sqrt(
                2.0 / in_dim)
            ki += 1
            trunk.append((W, jnp.zeros((out_dim_l,), jnp.float32)))
            in_dim = out_dim_l

    out_in = units[-1] + (input_dim if concat else 0)
    limit = jnp.sqrt(6.0 / (out_in + output_dim))  # xavier_uniform
    Wout = jax.random.uniform(keys[ki], (out_in, output_dim), jnp.float32,
                              minval=-limit, maxval=limit)
    ki += 1
    bout = jnp.zeros((output_dim,), jnp.float32)

    mean = jax.random.normal(keys[ki], (input_dim,), jnp.float32)
    ki += 1
    scale = jnp.abs(jax.random.normal(keys[ki], (input_dim,), jnp.float32)) + 0.5
    return {"mean": mean, "scale": scale, "trunk": trunk, "out": (Wout, bout)}


if __name__ == "__main__":
    key = jax.random.PRNGKey(0)
    kx, kp1, kp2, kp3 = jax.random.split(key, 4)

    B, input_dim, output_dim = 16, 4, 3
    x = jax.random.normal(kx, (B, input_dim), jnp.float32)

    def check(name, params, residual, concat, xin):
        ref = ptnet_reference(xin, params, residual=residual, concat=concat)
        # f32 weights: tight agreement (verifies kernel / prepare logic).
        prep32 = prepare_params(params, residual=residual, concat=concat,
                                dtype=jnp.float32)
        y32 = jax.block_until_ready(ptnet_forward(xin, prep32))
        assert y32.shape == ref.shape
        assert jnp.allclose(y32, ref, rtol=1e-4, atol=1e-4), f"{name}: f32 mismatch"
        # Default bf16 weights (MXU fast path): loose tolerance, logic already
        # verified above in f32.
        prep16 = prepare_params(params, residual=residual, concat=concat)
        y16 = jax.block_until_ready(ptnet_forward(xin, prep16))
        err = float(jnp.max(jnp.abs(y16 - ref)))
        assert err < 0.5, f"{name}: bf16 path mismatch (max abs err {err})"
        return prep16

    # Config 1: residual trunk + concat output (ResidualBlock path).
    p1 = init_params(kp1, input_dim, output_dim, [32, 32, 32],
                     residual=True, concat=True)
    check("residual+concat", p1, True, True, x)

    # Config 2: plain Linear+SiLU stack, no concat (default PTNet path).
    p2 = init_params(kp2, input_dim, output_dim, [32, 32],
                     residual=False, concat=False)
    prep2 = check("plain", p2, False, False, x)

    # Config 3: plain trunk with mixed widths + concat (exercises the widened
    # lane-space fusion with a gap between trunk and input lanes).
    p3 = init_params(kp3, input_dim, output_dim, [48, 32],
                     residual=False, concat=True)
    check("plain+concat", p3, False, True, x)

    # Config 4: ragged batch (not a multiple of 8/tile) -> pad-and-slice path.
    x4 = x[:13]
    y4 = jax.block_until_ready(ptnet_forward(x4, prep2))
    ref4 = ptnet_reference(x4, p2, residual=False, concat=False)
    assert y4.shape == (13, output_dim)
    assert float(jnp.max(jnp.abs(y4 - ref4))) < 0.5, "ragged-batch mismatch"

    print("KERNEL_OK")
</pallas_src>

<mosaic_0001>
module attributes {stable_mosaic.version = 11 : i64} {
  func.func @kernel(%arg0: i32, %arg1: memref<16x36xf32, #tpu.memory_space<vmem>>, %arg2: memref<1x36xf32, #tpu.memory_space<vmem>>, %arg3: memref<1x36xf32, #tpu.memory_space<vmem>>, %arg4: memref<36x36xf32, #tpu.memory_space<vmem>>, %arg5: memref<1x36xf32, #tpu.memory_space<vmem>>, %arg6: memref<36x36xf32, #tpu.memory_space<vmem>>, %arg7: memref<1x36xf32, #tpu.memory_space<vmem>>, %arg8: memref<36x36xf32, #tpu.memory_space<vmem>>, %arg9: memref<1x36xf32, #tpu.memory_space<vmem>>, %arg10: memref<36x3xf32, #tpu.memory_space<vmem>>, %arg11: memref<1x3xf32, #tpu.memory_space<vmem>>, %arg12: memref<16x3xf32, #tpu.memory_space<vmem>>) attributes {dimension_semantics = [#tpu.dimension_semantics<parallel>], iteration_bounds = array<i64: 1>, scalar_prefetch = 0 : i64, scratch_operands = 0 : i64, tpu.core_type = #tpu.core_type<tc>, window_params = [{transform_indices = @transform_0, window_bounds = array<i64: 16, 36>}, {pipeline_mode = #tpu.pipeline_mode<synchronous>, transform_indices = @transform_1, window_bounds = array<i64: 1, 36>}, {pipeline_mode = #tpu.pipeline_mode<synchronous>, transform_indices = @transform_2, window_bounds = array<i64: 1, 36>}, {pipeline_mode = #tpu.pipeline_mode<synchronous>, transform_indices = @transform_3, window_bounds = array<i64: 36, 36>}, {pipeline_mode = #tpu.pipeline_mode<synchronous>, transform_indices = @transform_4, window_bounds = array<i64: 1, 36>}, {pipeline_mode = #tpu.pipeline_mode<synchronous>, transform_indices = @transform_5, window_bounds = array<i64: 36, 36>}, {pipeline_mode = #tpu.pipeline_mode<synchronous>, transform_indices = @transform_6, window_bounds = array<i64: 1, 36>}, {pipeline_mode = #tpu.pipeline_mode<synchronous>, transform_indices = @transform_7, window_bounds = array<i64: 36, 36>}, {pipeline_mode = #tpu.pipeline_mode<synchronous>, transform_indices = @transform_8, window_bounds = array<i64: 1, 36>}, {pipeline_mode = #tpu.pipeline_mode<synchronous>, transform_indices = @transform_9, window_bounds = array<i64: 36, 3>}, {pipeline_mode = #tpu.pipeline_mode<synchronous>, transform_indices = @transform_10, window_bounds = array<i64: 1, 3>}, {transform_indices = @transform_11, window_bounds = array<i64: 16, 3>}]} {
    %c0 = arith.constant 0 : index
    %c0_0 = arith.constant 0 : index
    %0 = vector.load %arg1[%c0, %c0_0] : memref<16x36xf32, #tpu.memory_space<vmem>>, vector<16x36xf32>
    %c0_1 = arith.constant 0 : index
    %c0_2 = arith.constant 0 : index
    %1 = vector.load %arg2[%c0_1, %c0_2] : memref<1x36xf32, #tpu.memory_space<vmem>>, vector<1x36xf32>
    %2 = vector.broadcast %1 : vector<1x36xf32> to vector<16x36xf32>
    %3 = arith.mulf %0, %2 : vector<16x36xf32>
    %c0_3 = arith.constant 0 : index
    %c0_4 = arith.constant 0 : index
    %4 = vector.load %arg3[%c0_3, %c0_4] : memref<1x36xf32, #tpu.memory_space<vmem>>, vector<1x36xf32>
    %5 = vector.broadcast %4 : vector<1x36xf32> to vector<16x36xf32>
    %6 = arith.subf %3, %5 : vector<16x36xf32>
    %c0_5 = arith.constant 0 : index
    %c0_6 = arith.constant 0 : index
    %7 = vector.load %arg4[%c0_5, %c0_6] : memref<36x36xf32, #tpu.memory_space<vmem>>, vector<36x36xf32>
    %cst = arith.constant dense<0.000000e+00> : vector<16x36xf32>
    %8 = tpu.matmul %6, %7, %cst {dimension_numbers = #tpu.dot_dimension_numbers<[1], [0], [0], [1], [0, 0, 1, 1], [], []>} : vector<16x36xf32>, vector<36x36xf32>, vector<16x36xf32> -> vector<16x36xf32>
    %c0_7 = arith.constant 0 : index
    %c0_8 = arith.constant 0 : index
    %9 = vector.load %arg5[%c0_7, %c0_8] : memref<1x36xf32, #tpu.memory_space<vmem>>, vector<1x36xf32>
    %10 = vector.broadcast %9 : vector<1x36xf32> to vector<16x36xf32>
    %11 = arith.addf %8, %10 : vector<16x36xf32>
    %12 = arith.negf %11 : vector<16x36xf32>
    %13 = math.exp %12 : vector<16x36xf32>
    %cst_9 = arith.constant 1.000000e+00 : f32
    %14 = vector.broadcast %cst_9 : f32 to vector<16x36xf32>
    %15 = arith.addf %14, %13 : vector<16x36xf32>
    %16 = arith.divf %14, %15 : vector<16x36xf32>
    %17 = arith.mulf %11, %16 : vector<16x36xf32>
    %c0_10 = arith.constant 0 : index
    %c0_11 = arith.constant 0 : index
    %18 = vector.load %arg6[%c0_10, %c0_11] : memref<36x36xf32, #tpu.memory_space<vmem>>, vector<36x36xf32>
    %cst_12 = arith.constant dense<0.000000e+00> : vector<16x36xf32>
    %19 = tpu.matmul %17, %18, %cst_12 {dimension_numbers = #tpu.dot_dimension_numbers<[1], [0], [0], [1], [0, 0, 1, 1], [], []>} : vector<16x36xf32>, vector<36x36xf32>, vector<16x36xf32> -> vector<16x36xf32>
    %c0_13 = arith.constant 0 : index
    %c0_14 = arith.constant 0 : index
    %20 = vector.load %arg7[%c0_13, %c0_14] : memref<1x36xf32, #tpu.memory_space<vmem>>, vector<1x36xf32>
    %21 = vector.broadcast %20 : vector<1x36xf32> to vector<16x36xf32>
    %22 = arith.addf %19, %21 : vector<16x36xf32>
    %23 = arith.negf %22 : vector<16x36xf32>
    %24 = math.exp %23 : vector<16x36xf32>
    %cst_15 = arith.constant 1.000000e+00 : f32
    %25 = vector.broadcast %cst_15 : f32 to vector<16x36xf32>
    %26 = arith.addf %25, %24 : vector<16x36xf32>
    %27 = arith.divf %25, %26 : vector<16x36xf32>
    %28 = arith.mulf %22, %27 : vector<16x36xf32>
    %c0_16 = arith.constant 0 : index
    %c0_17 = arith.constant 0 : index
    %29 = vector.load %arg8[%c0_16, %c0_17] : memref<36x36xf32, #tpu.memory_space<vmem>>, vector<36x36xf32>
    %cst_18 = arith.constant dense<0.000000e+00> : vector<16x36xf32>
    %30 = tpu.matmul %28, %29, %cst_18 {dimension_numbers = #tpu.dot_dimension_numbers<[1], [0], [0], [1], [0, 0, 1, 1], [], []>} : vector<16x36xf32>, vector<36x36xf32>, vector<16x36xf32> -> vector<16x36xf32>
    %c0_19 = arith.constant 0 : index
    %c0_20 = arith.constant 0 : index
    %31 = vector.load %arg9[%c0_19, %c0_20] : memref<1x36xf32, #tpu.memory_space<vmem>>, vector<1x36xf32>
    %32 = vector.broadcast %31 : vector<1x36xf32> to vector<16x36xf32>
    %33 = arith.addf %30, %32 : vector<16x36xf32>
    %34 = arith.addf %33, %17 : vector<16x36xf32>
    %35 = arith.negf %34 : vector<16x36xf32>
    %36 = math.exp %35 : vector<16x36xf32>
    %cst_21 = arith.constant 1.000000e+00 : f32
    %37 = vector.broadcast %cst_21 : f32 to vector<16x36xf32>
    %38 = arith.addf %37, %36 : vector<16x36xf32>
    %39 = arith.divf %37, %38 : vector<16x36xf32>
    %40 = arith.mulf %34, %39 : vector<16x36xf32>
    %41 = arith.addf %40, %6 : vector<16x36xf32>
    %c0_22 = arith.constant 0 : index
    %c0_23 = arith.constant 0 : index
    %42 = vector.load %arg10[%c0_22, %c0_23] : memref<36x3xf32, #tpu.memory_space<vmem>>, vector<36x3xf32>
    %cst_24 = arith.constant dense<0.000000e+00> : vector<16x3xf32>
    %43 = tpu.matmul %41, %42, %cst_24 {dimension_numbers = #tpu.dot_dimension_numbers<[1], [0], [0], [1], [0, 0, 1, 1], [], []>} : vector<16x36xf32>, vector<36x3xf32>, vector<16x3xf32> -> vector<16x3xf32>
    %c0_25 = arith.constant 0 : index
    %c0_26 = arith.constant 0 : index
    %44 = vector.load %arg11[%c0_25, %c0_26] : memref<1x3xf32, #tpu.memory_space<vmem>>, vector<1x3xf32>
    %45 = vector.broadcast %44 : vector<1x3xf32> to vector<16x3xf32>
    %46 = arith.addf %43, %45 : vector<16x3xf32>
    %c0_27 = arith.constant 0 : index
    %c0_28 = arith.constant 0 : index
    %47 = vector.load %arg12[%c0_27, %c0_28] : memref<16x3xf32, #tpu.memory_space<vmem>>, vector<16x3xf32>
    tpu.vector_store %arg12[%c0_27, %c0_28], %46 {strides = array<i32>} : memref<16x3xf32, #tpu.memory_space<vmem>>, vector<16x3xf32>,
    return
  }
  func.func @transform_0(%arg0: i32) -> (i32, i32) {
    %c0_i32 = arith.constant 0 : i32
    %c0_i32_0 = arith.constant 0 : i32
    return %arg0, %c0_i32 : i32, i32
  }
  func.func @transform_1(%arg0: i32) -> (i32, i32) {
    %c0_i32 = arith.constant 0 : i32
    %c0_i32_0 = arith.constant 0 : i32
    %c0_i32_1 = arith.constant 0 : i32
    return %c0_i32, %c0_i32_0 : i32, i32
  }
  func.func @transform_2(%arg0: i32) -> (i32, i32) {
    %c0_i32 = arith.constant 0 : i32
    %c0_i32_0 = arith.constant 0 : i32
    %c0_i32_1 = arith.constant 0 : i32
    return %c0_i32, %c0_i32_0 : i32, i32
  }
  func.func @transform_3(%arg0: i32) -> (i32, i32) {
    %c0_i32 = arith.constant 0 : i32
    %c0_i32_0 = arith.constant 0 : i32
    %c0_i32_1 = arith.constant 0 : i32
    return %c0_i32, %c0_i32_0 : i32, i32
  }
  func.func @transform_4(%arg0: i32) -> (i32, i32) {
    %c0_i32 = arith.constant 0 : i32
    %c0_i32_0 = arith.constant 0 : i32
    %c0_i32_1 = arith.constant 0 : i32
    return %c0_i32, %c0_i32_0 : i32, i32
  }
  func.func @transform_5(%arg0: i32) -> (i32, i32) {
    %c0_i32 = arith.constant 0 : i32
    %c0_i32_0 = arith.constant 0 : i32
    %c0_i32_1 = arith.constant 0 : i32
    return %c0_i32, %c0_i32_0 : i32, i32
  }
  func.func @transform_6(%arg0: i32) -> (i32, i32) {
    %c0_i32 = arith.constant 0 : i32
    %c0_i32_0 = arith.constant 0 : i32
    %c0_i32_1 = arith.constant 0 : i32
    return %c0_i32, %c0_i32_0 : i32, i32
  }
  func.func @transform_7(%arg0: i32) -> (i32, i32) {
    %c0_i32 = arith.constant 0 : i32
    %c0_i32_0 = arith.constant 0 : i32
    %c0_i32_1 = arith.constant 0 : i32
    return %c0_i32, %c0_i32_0 : i32, i32
  }
  func.func @transform_8(%arg0: i32) -> (i32, i32) {
    %c0_i32 = arith.constant 0 : i32
    %c0_i32_0 = arith.constant 0 : i32
    %c0_i32_1 = arith.constant 0 : i32
    return %c0_i32, %c0_i32_0 : i32, i32
  }
  func.func @transform_9(%arg0: i32) -> (i32, i32) {
    %c0_i32 = arith.constant 0 : i32
    %c0_i32_0 = arith.constant 0 : i32
    %c0_i32_1 = arith.constant 0 : i32
    return %c0_i32, %c0_i32_0 : i32, i32
  }
  func.func @transform_10(%arg0: i32) -> (i32, i32) {
    %c0_i32 = arith.constant 0 : i32
    %c0_i32_0 = arith.constant 0 : i32
    %c0_i32_1 = arith.constant 0 : i32
    return %c0_i32, %c0_i32_0 : i32, i32
  }
  func.func @transform_11(%arg0: i32) -> (i32, i32) {
    %c0_i32 = arith.constant 0 : i32
    %c0_i32_0 = arith.constant 0 : i32
    return %arg0, %c0_i32 : i32, i32
  }
}

</mosaic_0001>

<llo_original>
// kernel: tpu_custom_call.1
$region0: #{tpu_custom_call.1}
  #allocation0 [shape = 'u32[]', space=smem, size = 0x4, offset = 0x4, fixed_abs, tag = 'smem constant byte address 0x4 - core index']
  #allocation1 [shape = 'u32[144,128]{1,0:T(1,128)}', space=vmem, size = 0x12000, scoped, tag = 'internal scratch']
  %s0 = inlined_call_operand.hbm [shape: f32[16,36], index: 0, kind: input, shape index: {}]
  %s1 = inlined_call_operand.vmem [shape: f32[1,36], index: 1, kind: input, shape index: {}]
  %s2 = inlined_call_operand.vmem [shape: f32[1,36], index: 2, kind: input, shape index: {}]
  %s3 = inlined_call_operand.vmem [shape: f32[36,36], index: 3, kind: input, shape index: {}]
  %s4 = inlined_call_operand.vmem [shape: f32[1,36], index: 4, kind: input, shape index: {}]
  %s5 = inlined_call_operand.hbm [shape: f32[36,36], index: 5, kind: input, shape index: {}]
  %s6 = inlined_call_operand.vmem [shape: f32[1,36], index: 6, kind: input, shape index: {}]
  %s7 = inlined_call_operand.hbm [shape: f32[36,36], index: 7, kind: input, shape index: {}]
  %s8 = inlined_call_operand.vmem [shape: f32[1,36], index: 8, kind: input, shape index: {}]
  %s9 = inlined_call_operand.vmem [shape: f32[36,3], index: 9, kind: input, shape index: {}]
  %s10 = inlined_call_operand.vmem [shape: f32[1,3], index: 10, kind: input, shape index: {}]
  %s11 = inlined_call_operand.vmem [shape: f32[16,3], index: 11, kind: output, shape index: {}]
  %s12 = sld [smem:[#allocation0]]
  $region66: #{tpu_custom_call.1} parent=0
    _
  %s14 = ssub.s32 1, %s12
  %s15 = scalar_select 0, %s14, %s12
  $region1: #{tpu_custom_call.1} parent=0
    #allocation2 [shape = 'u8[8192]{0}', space=vmem, size = 0x2000, scoped, tag = 'input window, operand 0, single buffered']
    #allocation3 [shape = 's32[1]{0}', space=sflag, size = 0x4, scoped, tag = 'scoped memory for tpu_custom_call.1']
    #allocation4 [shape = 'u8[20480]{0}', space=vmem, size = 0x5000, scoped, tag = 'input window, operand 5, single buffered']
    #allocation5 [shape = 's32[1]{0}', space=sflag, size = 0x4, scoped, tag = 'scoped memory for tpu_custom_call.1']
    #allocation6 [shape = 'u8[20480]{0}', space=vmem, size = 0x5000, scoped, tag = 'input window, operand 7, single buffered']
    %16 = vsyncpa [#allocation3], 0
    %17 = vsyncpa [#allocation5], 0
    // Predicated region
    $region2: #{tpu_custom_call.1} parent=1 // pred_check
      _
    $region3: #{tpu_custom_call.1} parent=1 // pred_check_branch
      %19 = sbr.rel (0) target = $region5
    $region4: #{tpu_custom_call.1} parent=1 // pred_region
      %s21 = ssub.s32 256, 256
      %22 = vsyncadd [#allocation3], %s21
      %s23 = sshll.u32 [#allocation2], 4
      %s24 = int_to_ptr.vmem [resolvable:$true] %s23
      %29 = dma.hbm_to_vmem [thread:$0]  %s0, 256, %s24, [#allocation3], 128, 128, 8
    $region5: #{tpu_custom_call.1} parent=1 // pred_fallthru
      _
    // Predicated region
    $region6: #{tpu_custom_call.1} parent=1 // pred_check
      _
    $region7: #{tpu_custom_call.1} parent=1 // pred_check_branch
      %31 = sbr.rel (0) target = $region9
    $region8: #{tpu_custom_call.1} parent=1 // pred_region
      _
    $region9: #{tpu_custom_call.1} parent=1 // pred_fallthru
      _
    // Predicated region
    $region10: #{tpu_custom_call.1} parent=1 // pred_check
      _
    $region11: #{tpu_custom_call.1} parent=1 // pred_check_branch
      %33 = sbr.rel (0) target = $region13
    $region12: #{tpu_custom_call.1} parent=1 // pred_region
      _
    $region13: #{tpu_custom_call.1} parent=1 // pred_fallthru
      _
    // Predicated region
    $region14: #{tpu_custom_call.1} parent=1 // pred_check
      _
    $region15: #{tpu_custom_call.1} parent=1 // pred_check_branch
      %35 = sbr.rel (0) target = $region17
    $region16: #{tpu_custom_call.1} parent=1 // pred_region
      _
    $region17: #{tpu_custom_call.1} parent=1 // pred_fallthru
      _
    // Predicated region
    $region18: #{tpu_custom_call.1} parent=1 // pred_check
      _
    $region19: #{tpu_custom_call.1} parent=1 // pred_check_branch
      %37 = sbr.rel (0) target = $region21
    $region20: #{tpu_custom_call.1} parent=1 // pred_region
      _
    $region21: #{tpu_custom_call.1} parent=1 // pred_fallthru
      _
    // Predicated region
    $region22: #{tpu_custom_call.1} parent=1 // pred_check
      _
    $region23: #{tpu_custom_call.1} parent=1 // pred_check_branch
      %39 = sbr.rel (0) target = $region25
    $region24: #{tpu_custom_call.1} parent=1 // pred_region
      %s41 = ssub.s32 640, 640
      %42 = vsyncadd [#allocation5], %s41
      %s43 = sshll.u32 [#allocation4], 4
      %s44 = int_to_ptr.vmem [resolvable:$true] %s43
      %49 = dma.hbm_to_vmem [thread:$0]  %s5, 640, %s44, [#allocation5], 128, 128, 8
    $region25: #{tpu_custom_call.1} parent=1 // pred_fallthru
      _
    // Predicated region
    $region26: #{tpu_custom_call.1} parent=1 // pred_check
      _
    $region27: #{tpu_custom_call.1} parent=1 // pred_check_branch
      %51 = sbr.rel (0) target = $region29
    $region28: #{tpu_custom_call.1} parent=1 // pred_region
      _
    $region29: #{tpu_custom_call.1} parent=1 // pred_fallthru
      _
    // Predicated region
    $region30: #{tpu_custom_call.1} parent=1 // pred_check
      _
    $region31: #{tpu_custom_call.1} parent=1 // pred_check_branch
      %53 = sbr.rel (0) target = $region33
    $region32: #{tpu_custom_call.1} parent=1 // pred_region
      %s55 = ssub.s32 640, 640
      %56 = vsyncadd [#allocation5], %s55
      %s57 = sshll.u32 [#allocation6], 4
      %s58 = int_to_ptr.vmem [resolvable:$true] %s57
      %63 = dma.hbm_to_vmem [thread:$0]  %s7, 640, %s58, [#allocation5], 128, 128, 8
    $region33: #{tpu_custom_call.1} parent=1 // pred_fallthru
      _
    // Predicated region
    $region34: #{tpu_custom_call.1} parent=1 // pred_check
      _
    $region35: #{tpu_custom_call.1} parent=1 // pred_check_branch
      %65 = sbr.rel (0) target = $region37
    $region36: #{tpu_custom_call.1} parent=1 // pred_region
      _
    $region37: #{tpu_custom_call.1} parent=1 // pred_fallthru
      _
    // Predicated region
    $region38: #{tpu_custom_call.1} parent=1 // pred_check
      _
    $region39: #{tpu_custom_call.1} parent=1 // pred_check_branch
      %67 = sbr.rel (0) target = $region41
    $region40: #{tpu_custom_call.1} parent=1 // pred_region
      _
    $region41: #{tpu_custom_call.1} parent=1 // pred_fallthru
      _
    // Predicated region
    $region42: #{tpu_custom_call.1} parent=1 // pred_check
      _
    $region43: #{tpu_custom_call.1} parent=1 // pred_check_branch
      %69 = sbr.rel (0) target = $region45
    $region44: #{tpu_custom_call.1} parent=1 // pred_region
      _
    $region45: #{tpu_custom_call.1} parent=1 // pred_fallthru
      _
    // Predicated region
    $region46: #{tpu_custom_call.1} parent=1 // pred_check
      _
    $region47: #{tpu_custom_call.1} parent=1 // pred_check_branch
      %71 = sbr.rel (0) target = $region49
    $region48: #{tpu_custom_call.1} parent=1 // pred_region
      %72 = dma.done [#allocation3], 256
    $region49: #{tpu_custom_call.1} parent=1 // pred_fallthru
      _
    // Predicated region
    $region50: #{tpu_custom_call.1} parent=1 // pred_check
      _
    $region51: #{tpu_custom_call.1} parent=1 // pred_check_branch
      %74 = sbr.rel (0) target = $region53
    $region52: #{tpu_custom_call.1} parent=1 // pred_region
      %75 = dma.done [#allocation5], 640
    $region53: #{tpu_custom_call.1} parent=1 // pred_fallthru
      _
    // Predicated region
    $region54: #{tpu_custom_call.1} parent=1 // pred_check
      _
    $region55: #{tpu_custom_call.1} parent=1 // pred_check_branch
      %77 = sbr.rel (0) target = $region57
    $region56: #{tpu_custom_call.1} parent=1 // pred_region
      %78 = dma.done [#allocation5], 640
    $region57: #{tpu_custom_call.1} parent=1 // pred_fallthru
      _
    %v79 = vld [vmem:[#allocation2] sm:$0xff]
    %v80 = vld [vmem:[#allocation2 + $0x8] sm:$0xff]
    %v81 = vld [vmem:[%s1] sm:$0x1]
    %v83 = vlaneseq
    %v84 = vshrl.u32 %v83, 7
    %v85 = vsub.s32 0, %v84
    %v86 = vrot.slane %v81, %v85
    %v88 = vmul.f32 %v79, %v86
    %v89 = vmul.f32 %v80, %v86
    %v90 = vld [vmem:[%s2] sm:$0x1]
    %v92 = vlaneseq
    %v93 = vshrl.u32 %v92, 7
    %v94 = vsub.s32 0, %v93
    %v95 = vrot.slane %v90, %v94
    %v97 = vsub.f32 %v88, %v95
    %v98 = vsub.f32 %v89, %v95
    %v99 = vld [vmem:[%s3] sm:$0xff]
    %v100 = vld [vmem:[%s3 + $0x8] sm:$0xff]
    %v101 = vld [vmem:[%s3 + $0x10] sm:$0xff]
    %v102 = vld [vmem:[%s3 + $0x18] sm:$0xff]
    %v103 = vld [vmem:[%s3 + $0x20] sm:$0xf]
    %v104 = vld [vmem:[%s4] sm:$0x1]
    %v106 = vlaneseq
    %v107 = vshrl.u32 %v106, 7
    %v108 = vsub.s32 0, %v107
    %v109 = vrot.slane %v104, %v108
    %vm111 = vcmask 293888
    %v113 = vsel %vm111, %v97, 0
    %v116 = vsel %vm111, %v98, 0
    %vm118 = vcmask 1043456
    %v120 = vsel %vm118, %v103, 0
    %122 = vmatprep.subr.mxu0 0.0
    %123 = vmatpush1.msra.mxu0 %v99
    %124 = vmatprep.subr.mxu0 0.0
    %125 = vmatpush1.msra.mxu0 %v100
    %126 = vmatprep.subr.mxu0 0.0
    %127 = vmatpush1.msra.mxu0 %v101
    %128 = vmatprep.subr.mxu0 0.0
    %129 = vmatpush1.msra.mxu0 %v102
    %130 = vmatprep.subr.mxu0 0.0
    %131 = vmatpush1.msra.mxu0 %v120
    %132 = vmatprep.subr.mxu0 0.0
    %133 = vmatpush1.msra.mxu0 0.0
    %134 = vmatprep.subr.mxu0 0.0
    %135 = vmatpush1.msra.mxu0 0.0
    %136 = vmatprep.subr.mxu0 0.0
    %137 = vmatpush1.msra.mxu0 0.0
    %138 = vmatprep.subr.mxu0 0.0
    %139 = vmatpush1.msra.mxu0 0.0
    %140 = vmatprep.subr.mxu0 0.0
    %141 = vmatpush1.msra.mxu0 0.0
    %142 = vmatprep.subr.mxu0 0.0
    %143 = vmatpush1.msra.mxu0 0.0
    %144 = vmatprep.subr.mxu0 0.0
    %145 = vmatpush1.msra.mxu0 0.0
    %146 = vmatprep.subr.mxu0 0.0
    %147 = vmatpush1.msra.mxu0 0.0
    %148 = vmatprep.subr.mxu0 0.0
    %149 = vmatpush1.msra.mxu0 0.0
    %150 = vmatprep.subr.mxu0 0.0
    %151 = vmatpush1.msra.mxu0 0.0
    %152 = vmatprep.subr.mxu0 0.0
    %153 = vmatpush1.msra.mxu0 0.0
    %154 = vmatprep.subr.mxu0 0.0
    %155 = vmatpush1.msra.mxu0 0.0
    %156 = vmatprep.subr.mxu0 0.0
    %157 = vmatpush1.msra.mxu0 0.0
    %158 = vmatprep.subr.mxu0 0.0
    %159 = vmatpush1.msra.mxu0 0.0
    %160 = vmatprep.subr.mxu0 0.0
    %161 = vmatpush1.msra.mxu0 0.0
    %162 = vmatprep.subr.mxu0 0.0
    %163 = vmatpush1.msra.mxu0 0.0
    %164 = vmatprep.subr.mxu0 0.0
    %165 = vmatpush1.msra.mxu0 0.0
    %166 = vmatprep.subr.mxu0 0.0
    %167 = vmatpush1.msra.mxu0 0.0
    %168 = vmatprep.subr.mxu0 0.0
    %169 = vmatpush1.msra.mxu0 0.0
    %170 = vmatprep.subr.mxu0 0.0
    %171 = vmatpush1.msra.mxu0 0.0
    %172 = vmatprep.subr.mxu0 0.0
    %173 = vmatpush1.msra.mxu0 0.0
    %174 = vmatprep.subr.mxu0 0.0
    %175 = vmatpush1.msra.mxu0 0.0
    %176 = vmatprep.subr.mxu0 0.0
    %177 = vmatpush1.msra.mxu0 0.0
    %178 = vmatprep.subr.mxu0 0.0
    %179 = vmatpush1.msra.mxu0 0.0
    %180 = vmatprep.subr.mxu0 0.0
    %181 = vmatpush1.msra.mxu0 0.0
    %182 = vmatprep.subr.mxu0 0.0
    %183 = vmatpush1.msra.mxu0 0.0
    %184 = vmatprep.subr.mxu0 0.0
    %185 = vmatpush1.msra.mxu0 0.0
    %186 = vmatprep.mubr.f32.mxu0 0.0
    %187 = vmatmul.mubr.f32.gmra.mrb[0].mxu0 %v113
    %v188 = vpop.f32.mrb[0].mxu0
    %v189 = vadd.f32 %v109, %v188
    %v190 = vpop.f32.mrb[0].mxu0
    %191 = vmatprep.mubr.f32.mxu0 0.0
    %192 = vmatmul.mubr.f32.gmra.mrb[0].mxu0 %v116
    %v193 = vpop.f32.mrb[0].mxu0
    %v194 = vadd.f32 %v109, %v193
    %v195 = vpop.f32.mrb[0].mxu0
    %196 = vdwg.mxu0
    %v197 = vxor.u32 %v189, 2147483648
    %v198 = vxor.u32 %v194, 2147483648
    %v199 = vmul.f32 %v197, 1.442695
    %v200 = vpow.pop %v199
    %v201 = vmul.f32 %v198, 1.442695
    %v202 = vpow.pop %v201
    %v203 = vadd.f32 %v200, 1.0
    %v204 = vadd.f32 %v202, 1.0
    %v205 = vrcp.pop %v203
    %v206 = vmul.f32 1.0, %v205
    %v207 = vrcp.pop %v204
    %v208 = vmul.f32 1.0, %v207
    %v209 = vmul.f32 %v189, %v206
    %v210 = vmul.f32 %v194, %v208
    %v211 = vld [vmem:[#allocation4] sm:$0xff]
    %v212 = vld [vmem:[#allocation4 + $0x8] sm:$0xff]
    %v213 = vld [vmem:[#allocation4 + $0x10] sm:$0xff]
    %v214 = vld [vmem:[#allocation4 + $0x18] sm:$0xff]
    %v215 = vld [vmem:[#allocation4 + $0x20] sm:$0xf]
    %v216 = vld [vmem:[%s6] sm:$0x1]
    %v218 = vlaneseq
    %v219 = vshrl.u32 %v218, 7
    %v220 = vsub.s32 0, %v219
    %v221 = vrot.slane %v216, %v220
    %v224 = vsel %vm111, %v209, 0
    %v227 = vsel %vm111, %v210, 0
    %v230 = vsel %vm118, %v215, 0
    %232 = vmatprep.subr.mxu0 0.0
    %233 = vmatpush1.msra.mxu0 %v211
    %234 = vmatprep.subr.mxu0 0.0
    %235 = vmatpush1.msra.mxu0 %v212
    %236 = vmatprep.subr.mxu0 0.0
    %237 = vmatpush1.msra.mxu0 %v213
    %238 = vmatprep.subr.mxu0 0.0
    %239 = vmatpush1.msra.mxu0 %v214
    %240 = vmatprep.subr.mxu0 0.0
    %241 = vmatpush1.msra.mxu0 %v230
    %242 = vmatprep.subr.mxu0 0.0
    %243 = vmatpush1.msra.mxu0 0.0
    %244 = vmatprep.subr.mxu0 0.0
    %245 = vmatpush1.msra.mxu0 0.0
    %246 = vmatprep.subr.mxu0 0.0
    %247 = vmatpush1.msra.mxu0 0.0
    %248 = vmatprep.subr.mxu0 0.0
    %249 = vmatpush1.msra.mxu0 0.0
    %250 = vmatprep.subr.mxu0 0.0
    %251 = vmatpush1.msra.mxu0 0.0
    %252 = vmatprep.subr.mxu0 0.0
    %253 = vmatpush1.msra.mxu0 0.0
    %254 = vmatprep.subr.mxu0 0.0
    %255 = vmatpush1.msra.mxu0 0.0
    %256 = vmatprep.subr.mxu0 0.0
    %257 = vmatpush1.msra.mxu0 0.0
    %258 = vmatprep.subr.mxu0 0.0
    %259 = vmatpush1.msra.mxu0 0.0
    %260 = vmatprep.subr.mxu0 0.0
    %261 = vmatpush1.msra.mxu0 0.0
    %262 = vmatprep.subr.mxu0 0.0
    %263 = vmatpush1.msra.mxu0 0.0
    %264 = vmatprep.subr.mxu0 0.0
    %265 = vmatpush1.msra.mxu0 0.0
    %266 = vmatprep.subr.mxu0 0.0
    %267 = vmatpush1.msra.mxu0 0.0
    %268 = vmatprep.subr.mxu0 0.0
    %269 = vmatpush1.msra.mxu0 0.0
    %270 = vmatprep.subr.mxu0 0.0
    %271 = vmatpush1.msra.mxu0 0.0
    %272 = vmatprep.subr.mxu0 0.0
    %273 = vmatpush1.msra.mxu0 0.0
    %274 = vmatprep.subr.mxu0 0.0
    %275 = vmatpush1.msra.mxu0 0.0
    %276 = vmatprep.subr.mxu0 0.0
    %277 = vmatpush1.msra.mxu0 0.0
    %278 = vmatprep.subr.mxu0 0.0
    %279 = vmatpush1.msra.mxu0 0.0
    %280 = vmatprep.subr.mxu0 0.0
    %281 = vmatpush1.msra.mxu0 0.0
    %282 = vmatprep.subr.mxu0 0.0
    %283 = vmatpush1.msra.mxu0 0.0
    %284 = vmatprep.subr.mxu0 0.0
    %285 = vmatpush1.msra.mxu0 0.0
    %286 = vmatprep.subr.mxu0 0.0
    %287 = vmatpush1.msra.mxu0 0.0
    %288 = vmatprep.subr.mxu0 0.0
    %289 = vmatpush1.msra.mxu0 0.0
    %290 = vmatprep.subr.mxu0 0.0
    %291 = vmatpush1.msra.mxu0 0.0
    %292 = vmatprep.subr.mxu0 0.0
    %293 = vmatpush1.msra.mxu0 0.0
    %294 = vmatprep.subr.mxu0 0.0
    %295 = vmatpush1.msra.mxu0 0.0
    %296 = vmatprep.mubr.f32.mxu0 0.0
    %297 = vmatmul.mubr.f32.gmra.mrb[0].mxu0 %v224
    %v298 = vpop.f32.mrb[0].mxu0
    %v299 = vadd.f32 %v221, %v298
    %v300 = vpop.f32.mrb[0].mxu0
    %301 = vmatprep.mubr.f32.mxu0 0.0
    %302 = vmatmul.mubr.f32.gmra.mrb[0].mxu0 %v227
    %v303 = vpop.f32.mrb[0].mxu0
    %v304 = vadd.f32 %v221, %v303
    %v305 = vpop.f32.mrb[0].mxu0
    %306 = vdwg.mxu0
    %v307 = vxor.u32 %v299, 2147483648
    %v308 = vxor.u32 %v304, 2147483648
    %v309 = vmul.f32 %v307, 1.442695
    %v310 = vpow.pop %v309
    %v311 = vmul.f32 %v308, 1.442695
    %v312 = vpow.pop %v311
    %v313 = vadd.f32 %v310, 1.0
    %v314 = vadd.f32 %v312, 1.0
    %v315 = vrcp.pop %v313
    %v316 = vmul.f32 1.0, %v315
    %v317 = vrcp.pop %v314
    %v318 = vmul.f32 1.0, %v317
    %v319 = vmul.f32 %v299, %v316
    %v320 = vmul.f32 %v304, %v318
    %v321 = vld [vmem:[#allocation6] sm:$0xff]
    %v322 = vld [vmem:[#allocation6 + $0x8] sm:$0xff]
    %v323 = vld [vmem:[#allocation6 + $0x10] sm:$0xff]
    %v324 = vld [vmem:[#allocation6 + $0x18] sm:$0xff]
    %v325 = vld [vmem:[#allocation6 + $0x20] sm:$0xf]
    %v326 = vld [vmem:[%s8] sm:$0x1]
    %v328 = vlaneseq
    %v329 = vshrl.u32 %v328, 7
    %v330 = vsub.s32 0, %v329
    %v331 = vrot.slane %v326, %v330
    %v334 = vsel %vm111, %v319, 0
    %v337 = vsel %vm111, %v320, 0
    %v340 = vsel %vm118, %v325, 0
    %342 = vmatprep.subr.mxu0 0.0
    %343 = vmatpush1.msra.mxu0 %v321
    %344 = vmatprep.subr.mxu0 0.0
    %345 = vmatpush1.msra.mxu0 %v322
    %346 = vmatprep.subr.mxu0 0.0
    %347 = vmatpush1.msra.mxu0 %v323
    %348 = vmatprep.subr.mxu0 0.0
    %349 = vmatpush1.msra.mxu0 %v324
    %350 = vmatprep.subr.mxu0 0.0
    %351 = vmatpush1.msra.mxu0 %v340
    %352 = vmatprep.subr.mxu0 0.0
    %353 = vmatpush1.msra.mxu0 0.0
    %354 = vmatprep.subr.mxu0 0.0
    %355 = vmatpush1.msra.mxu0 0.0
    %356 = vmatprep.subr.mxu0 0.0
    %357 = vmatpush1.msra.mxu0 0.0
    %358 = vmatprep.subr.mxu0 0.0
    %359 = vmatpush1.msra.mxu0 0.0
    %360 = vmatprep.subr.mxu0 0.0
    %361 = vmatpush1.msra.mxu0 0.0
    %362 = vmatprep.subr.mxu0 0.0
    %363 = vmatpush1.msra.mxu0 0.0
    %364 = vmatprep.subr.mxu0 0.0
    %365 = vmatpush1.msra.mxu0 0.0
    %366 = vmatprep.subr.mxu0 0.0
    %367 = vmatpush1.msra.mxu0 0.0
    %368 = vmatprep.subr.mxu0 0.0
    %369 = vmatpush1.msra.mxu0 0.0
    %370 = vmatprep.subr.mxu0 0.0
    %371 = vmatpush1.msra.mxu0 0.0
    %372 = vmatprep.subr.mxu0 0.0
    %373 = vmatpush1.msra.mxu0 0.0
    %374 = vmatprep.subr.mxu0 0.0
    %375 = vmatpush1.msra.mxu0 0.0
    %376 = vmatprep.subr.mxu0 0.0
    %377 = vmatpush1.msra.mxu0 0.0
    %378 = vmatprep.subr.mxu0 0.0
    %379 = vmatpush1.msra.mxu0 0.0
    %380 = vmatprep.subr.mxu0 0.0
    %381 = vmatpush1.msra.mxu0 0.0
    %382 = vmatprep.subr.mxu0 0.0
    %383 = vmatpush1.msra.mxu0 0.0
    %384 = vmatprep.subr.mxu0 0.0
    %385 = vmatpush1.msra.mxu0 0.0
    %386 = vmatprep.subr.mxu0 0.0
    %387 = vmatpush1.msra.mxu0 0.0
    %388 = vmatprep.subr.mxu0 0.0
    %389 = vmatpush1.msra.mxu0 0.0
    %390 = vmatprep.subr.mxu0 0.0
    %391 = vmatpush1.msra.mxu0 0.0
    %392 = vmatprep.subr.mxu0 0.0
    %393 = vmatpush1.msra.mxu0 0.0
    %394 = vmatprep.subr.mxu0 0.0
    %395 = vmatpush1.msra.mxu0 0.0
    %396 = vmatprep.subr.mxu0 0.0
    %397 = vmatpush1.msra.mxu0 0.0
    %398 = vmatprep.subr.mxu0 0.0
    %399 = vmatpush1.msra.mxu0 0.0
    %400 = vmatprep.subr.mxu0 0.0
    %401 = vmatpush1.msra.mxu0 0.0
    %402 = vmatprep.subr.mxu0 0.0
    %403 = vmatpush1.msra.mxu0 0.0
    %404 = vmatprep.subr.mxu0 0.0
    %405 = vmatpush1.msra.mxu0 0.0
    %406 = vmatprep.mubr.f32.mxu0 0.0
    %407 = vmatmul.mubr.f32.gmra.mrb[0].mxu0 %v334
    %v408 = vpop.f32.mrb[0].mxu0
    %v409 = vadd.f32 %v331, %v408
    %v410 = vpop.f32.mrb[0].mxu0
    %411 = vmatprep.mubr.f32.mxu0 0.0
    %412 = vmatmul.mubr.f32.gmra.mrb[0].mxu0 %v337
    %v413 = vpop.f32.mrb[0].mxu0
    %v414 = vadd.f32 %v331, %v413
    %v415 = vpop.f32.mrb[0].mxu0
    %416 = vdwg.mxu0
    %v417 = vadd.f32 %v409, %v209
    %v418 = vadd.f32 %v414, %v210
    %v419 = vxor.u32 %v417, 2147483648
    %v420 = vxor.u32 %v418, 2147483648
    %v421 = vmul.f32 %v419, 1.442695
    %v422 = vpow.pop %v421
    %v423 = vmul.f32 %v420, 1.442695
    %v424 = vpow.pop %v423
    %v425 = vadd.f32 %v422, 1.0
    %v426 = vadd.f32 %v424, 1.0
    %v427 = vrcp.pop %v425
    %v428 = vmul.f32 1.0, %v427
    %v429 = vrcp.pop %v426
    %v430 = vmul.f32 1.0, %v429
    %v431 = vmul.f32 %v417, %v428
    %v432 = vmul.f32 %v418, %v430
    %v433 = vadd.f32 %v431, %v97
    %v434 = vadd.f32 %v432, %v98
    %v435 = vld [vmem:[%s9] sm:$0xff]
    %v436 = vld [vmem:[%s9 + $0x8] sm:$0xff]
    %v437 = vld [vmem:[%s9 + $0x10] sm:$0xff]
    %v438 = vld [vmem:[%s9 + $0x18] sm:$0xff]
    %v439 = vld [vmem:[%s9 + $0x20] sm:$0xf]
    %v440 = vld [vmem:[%s10] sm:$0x1]
    %v442 = vlaneseq
    %v443 = vshrl.u32 %v442, 7
    %v444 = vsub.s32 0, %v443
    %v445 = vrot.slane %v440, %v444
    %v448 = vsel %vm111, %v433, 0
    %v451 = vsel %vm111, %v434, 0
    %v454 = vsel %vm118, %v439, 0
    %456 = vmatprep.subr.mxu0 0.0
    %457 = vmatpush1.msra.mxu0 %v435
    %458 = vmatprep.subr.mxu0 0.0
    %459 = vmatpush1.msra.mxu0 %v436
    %460 = vmatprep.subr.mxu0 0.0
    %461 = vmatpush1.msra.mxu0 %v437
    %462 = vmatprep.subr.mxu0 0.0
    %463 = vmatpush1.msra.mxu0 %v438
    %464 = vmatprep.subr.mxu0 0.0
    %465 = vmatpush1.msra.mxu0 %v454
    %466 = vmatprep.subr.mxu0 0.0
    %467 = vmatpush1.msra.mxu0 0.0
    %468 = vmatprep.subr.mxu0 0.0
    %469 = vmatpush1.msra.mxu0 0.0
    %470 = vmatprep.subr.mxu0 0.0
    %471 = vmatpush1.msra.mxu0 0.0
    %472 = vmatprep.subr.mxu0 0.0
    %473 = vmatpush1.msra.mxu0 0.0
    %474 = vmatprep.subr.mxu0 0.0
    %475 = vmatpush1.msra.mxu0 0.0
    %476 = vmatprep.subr.mxu0 0.0
    %477 = vmatpush1.msra.mxu0 0.0
    %478 = vmatprep.subr.mxu0 0.0
    %479 = vmatpush1.msra.mxu0 0.0
    %480 = vmatprep.subr.mxu0 0.0
    %481 = vmatpush1.msra.mxu0 0.0
    %482 = vmatprep.subr.mxu0 0.0
    %483 = vmatpush1.msra.mxu0 0.0
    %484 = vmatprep.subr.mxu0 0.0
    %485 = vmatpush1.msra.mxu0 0.0
    %486 = vmatprep.subr.mxu0 0.0
    %487 = vmatpush1.msra.mxu0 0.0
    %488 = vmatprep.subr.mxu0 0.0
    %489 = vmatpush1.msra.mxu0 0.0
    %490 = vmatprep.subr.mxu0 0.0
    %491 = vmatpush1.msra.mxu0 0.0
    %492 = vmatprep.subr.mxu0 0.0
    %493 = vmatpush1.msra.mxu0 0.0
    %494 = vmatprep.subr.mxu0 0.0
    %495 = vmatpush1.msra.mxu0 0.0
    %496 = vmatprep.subr.mxu0 0.0
    %497 = vmatpush1.msra.mxu0 0.0
    %498 = vmatprep.subr.mxu0 0.0
    %499 = vmatpush1.msra.mxu0 0.0
    %500 = vmatprep.subr.mxu0 0.0
    %501 = vmatpush1.msra.mxu0 0.0
    %502 = vmatprep.subr.mxu0 0.0
    %503 = vmatpush1.msra.mxu0 0.0
    %504 = vmatprep.subr.mxu0 0.0
    %505 = vmatpush1.msra.mxu0 0.0
    %506 = vmatprep.subr.mxu0 0.0
    %507 = vmatpush1.msra.mxu0 0.0
    %508 = vmatprep.subr.mxu0 0.0
    %509 = vmatpush1.msra.mxu0 0.0
    %510 = vmatprep.subr.mxu0 0.0
    %511 = vmatpush1.msra.mxu0 0.0
    %512 = vmatprep.subr.mxu0 0.0
    %513 = vmatpush1.msra.mxu0 0.0
    %514 = vmatprep.subr.mxu0 0.0
    %515 = vmatpush1.msra.mxu0 0.0
    %516 = vmatprep.subr.mxu0 0.0
    %517 = vmatpush1.msra.mxu0 0.0
    %518 = vmatprep.subr.mxu0 0.0
    %519 = vmatpush1.msra.mxu0 0.0
    %520 = vmatprep.mubr.f32.mxu0 0.0
    %521 = vmatmul.mubr.f32.gmra.mrb[0].mxu0 %v448
    %v522 = vpop.f32.mrb[0].mxu0
    %v523 = vadd.f32 %v445, %v522
    %v524 = vpop.f32.mrb[0].mxu0
    %525 = vmatprep.mubr.f32.mxu0 0.0
    %526 = vmatmul.mubr.f32.gmra.mrb[0].mxu0 %v451
    %v527 = vpop.f32.mrb[0].mxu0
    %v528 = vadd.f32 %v445, %v527
    %v529 = vpop.f32.mrb[0].mxu0
    %530 = vdwg.mxu0
    %vm531 = vcmask 23552
    %532 = vst.msk [vmem:[%s11] sm:$0xff] %vm531, %v523
    %533 = vst.msk [vmem:[%s11 + $0x8] sm:$0xff] %vm531, %v528
    // Predicated region
    $region58: #{tpu_custom_call.1} parent=1 // pred_check
      _
    $region59: #{tpu_custom_call.1} parent=1 // pred_check_branch
      %535 = sbr.rel (0) target = $region61
    $region60: #{tpu_custom_call.1} parent=1 // pred_region
      _
    $region61: #{tpu_custom_call.1} parent=1 // pred_fallthru
      _
    // Predicated region
    $region62: #{tpu_custom_call.1} parent=1 // pred_check
      _
    $region63: #{tpu_custom_call.1} parent=1 // pred_check_branch
      %537 = sbr.rel (0) target = $region65
    $region64: #{tpu_custom_call.1} parent=1 // pred_region
      _
    $region65: #{tpu_custom_call.1} parent=1 // pred_fallthru
      _
    %538 = vsyncpa [#allocation3], 1
    %539 = vsyncpa [#allocation5], 1

</llo_original>
